<compile_context>
chip_gen: v7x
topology: tpu7x:2x2x1
jax: 0.10.0
libtpu: 0.0.40
codegen_flags: <defaults>
</compile_context>

<pallas_src>
import functools

import jax
import jax.numpy as jnp
from jax.experimental import pallas as pl
from jax.experimental.pallas import tpu as pltpu

LANES = 128      # lane width (last dim of every block)
TM_SUM = 4096    # sum path: (4096,128) f32 = 2 MiB per input per buffer
TM_NONE = 2048   # 'none' path adds an f32 output stream -> keep v5e VMEM headroom


def _focal_term(x, t, alpha, gamma):
    """Elementwise focal loss term, computed in f32 (works in- or out-of-kernel)."""
    x = x.astype(jnp.float32)
    t = t.astype(jnp.float32)
    p = jax.nn.sigmoid(x)
    is_pos = (t == 1.0)                     # hoisted predicate (matches torch ==1)
    pt = jnp.where(is_pos, p, 1.0 - p)
    at = jnp.where(is_pos, jnp.float32(alpha), jnp.float32(1.0 - alpha))
    omp = 1.0 - pt
    g = float(gamma)
    if g == 2.0:                            # VPU square instead of EUP log+exp pow
        pw = omp * omp
    elif g == 1.0:
        pw = omp
    elif g == 0.0:
        pw = jnp.ones_like(omp)
    else:
        pw = jnp.power(omp, jnp.float32(g))
    return -at * pw * jnp.log(pt + jnp.float32(1e-08))


def _focal_sum_kernel(x_ref, t_ref, o_ref, *, alpha, gamma, valid_rows_last):
    """Per-block lane-dense partial sums (1, 1, LANES).

    The last block may be a Pallas implicit partial block (garbage rows past
    the array end); those rows are masked with a single trace-time row-count
    compare.  jnp.where (select) is used so NaN/Inf garbage cannot propagate.
    """
    tm = x_ref.shape[0]
    loss = _focal_term(x_ref[...], t_ref[...], alpha, gamma)

    if valid_rows_last == tm:               # static: every block fully valid
        o_ref[...] = jnp.sum(loss, axis=0, keepdims=True)[None]
    else:
        i = pl.program_id(0)
        last = pl.num_programs(0) - 1

        @pl.when(i != last)
        def _():
            o_ref[...] = jnp.sum(loss, axis=0, keepdims=True)[None]

        @pl.when(i == last)
        def _():
            row = jax.lax.broadcasted_iota(jnp.int32, loss.shape, 0)
            m = jnp.where(row < valid_rows_last, loss, jnp.float32(0.0))
            o_ref[...] = jnp.sum(m, axis=0, keepdims=True)[None]


def _focal_elem_kernel(x_ref, t_ref, o_ref, *, alpha, gamma):
    """Elementwise focal loss (reduction='none'); OOB rows of a partial last
    output block are dropped automatically by Pallas."""
    o_ref[...] = _focal_term(x_ref[...], t_ref[...], alpha, gamma)


def focal_loss(inputs, targets, alpha=0.25, gamma=2.0, reduction="mean",
               block_rows=None):
    """JAX/Pallas equivalent of FocalLoss.forward(inputs, targets).

    `block_rows` (optional) overrides the row-block size; it must be a
    multiple of 8 when smaller than the total row count (used for testing).
    """
    orig_shape = inputs.shape
    alpha = float(alpha)
    gamma = float(gamma)

    x = inputs.reshape(-1)
    t = targets.reshape(-1)
    n = x.shape[0]

    # Lane-aligned prefix goes through the kernel; the <128-element tail is
    # computed in plain JAX (avoids any full-array pad copy).
    n_main = (n // LANES) * LANES
    rem = n - n_main
    R = n_main // LANES

    is_reduce = reduction in ("mean", "sum")
    tm_cap = block_rows if block_rows is not None else (TM_SUM if is_reduce
                                                        else TM_NONE)

    if R > 0:
        x_main = x if rem == 0 else x[:n_main]
        t_main = t if rem == 0 else t[:n_main]
        x2 = x_main.reshape(R, LANES)
        t2 = t_main.reshape(R, LANES)
        if R <= tm_cap:
            tm, grid = R, 1                  # single block == full array dims
        else:
            tm = tm_cap                      # multiple of 8 -> valid block shape
            grid = (R + tm - 1) // tm        # last block may be partial
        valid_rows_last = R - (grid - 1) * tm

    if is_reduce:
        total = jnp.float32(0.0)
        if R > 0:
            kernel = functools.partial(
                _focal_sum_kernel, alpha=alpha, gamma=gamma,
                valid_rows_last=valid_rows_last)
            partials = pl.pallas_call(
                kernel,
                out_shape=jax.ShapeDtypeStruct((grid, 1, LANES), jnp.float32),
                grid_spec=pltpu.PrefetchScalarGridSpec(
                    num_scalar_prefetch=0,
                    grid=(grid,),
                    in_specs=[
                        pl.BlockSpec((tm, LANES), lambda i: (i, 0)),
                        pl.BlockSpec((tm, LANES), lambda i: (i, 0)),
                    ],
                    out_specs=pl.BlockSpec((1, 1, LANES), lambda i: (i, 0, 0)),
                ),
                compiler_params=pltpu.CompilerParams(
                    dimension_semantics=("parallel",)),
            )(x2, t2)
            total = total + jnp.sum(partials)   # tiny (grid,1,128) reduce outside
        if rem > 0:
            total = total + jnp.sum(_focal_term(x[n_main:], t[n_main:],
                                                alpha, gamma))
        if reduction == "mean":
            return total / jnp.float32(n)
        return total

    # reduction == 'none' (or anything else, matching the torch else-branch)
    parts = []
    if R > 0:
        kernel = functools.partial(_focal_elem_kernel, alpha=alpha, gamma=gamma)
        loss2 = pl.pallas_call(
            kernel,
            out_shape=jax.ShapeDtypeStruct((R, LANES), jnp.float32),
            grid_spec=pltpu.PrefetchScalarGridSpec(
                num_scalar_prefetch=0,
                grid=(grid,),
                in_specs=[
                    pl.BlockSpec((tm, LANES), lambda i: (i, 0)),
                    pl.BlockSpec((tm, LANES), lambda i: (i, 0)),
                ],
                out_specs=pl.BlockSpec((tm, LANES), lambda i: (i, 0)),
            ),
            compiler_params=pltpu.CompilerParams(
                dimension_semantics=("parallel",)),
        )(x2, t2)
        parts.append(loss2.reshape(-1))
    if rem > 0:
        parts.append(_focal_term(x[n_main:], t[n_main:], alpha, gamma))
    loss_flat = parts[0] if len(parts) == 1 else jnp.concatenate(parts)
    return loss_flat.reshape(orig_shape)


def _focal_loss_ref(inputs, targets, alpha=0.25, gamma=2.0, reduction="mean"):
    """Pure-JAX reference mirroring the PyTorch forward."""
    probas = jax.nn.sigmoid(inputs.astype(jnp.float32))
    t = targets.astype(jnp.float32)
    pt = jnp.where(t == 1.0, probas, 1.0 - probas)
    at = jnp.where(t == 1.0, alpha, 1.0 - alpha)
    loss = -at * (1.0 - pt) ** gamma * jnp.log(pt + 1e-08)
    if reduction == "mean":
        return loss.mean()
    if reduction == "sum":
        return loss.sum()
    return loss


if __name__ == "__main__":
    key = jax.random.PRNGKey(0)
    k1, k2, k3, k4, k5, k6 = jax.random.split(key, 6)

    # Case 1: dense per-pixel binary task (NCHW); lane-aligned, single block.
    shape = (2, 4, 16, 16)
    inputs = jax.random.normal(k1, shape, dtype=jnp.float32)
    targets = (jax.random.uniform(k2, shape) > 0.5).astype(jnp.float32)

    out_mean = focal_loss(inputs, targets, reduction="mean")
    out_sum = focal_loss(inputs, targets, reduction="sum")
    out_none = focal_loss(inputs, targets, reduction="none")
    jax.block_until_ready((out_mean, out_sum, out_none))

    assert jnp.allclose(out_mean, _focal_loss_ref(inputs, targets, reduction="mean"),
                        rtol=1e-4, atol=1e-5), out_mean
    assert jnp.allclose(out_sum, _focal_loss_ref(inputs, targets, reduction="sum"),
                        rtol=1e-4, atol=1e-3), out_sum
    assert jnp.allclose(out_none, _focal_loss_ref(inputs, targets, reduction="none"),
                        rtol=1e-4, atol=1e-5)

    # Case 2: ragged size + narrow (bf16) targets -> lane tail handled in plain
    # JAX, no pad copy, narrow target stream through the kernel.
    shape2 = (3, 5, 17, 13)   # 3315 elems: 3200 via kernel, 115-element tail
    inputs2 = jax.random.normal(k3, shape2, dtype=jnp.float32)
    targets2 = (jax.random.uniform(k4, shape2) > 0.5).astype(jnp.bfloat16)
    out2_mean = focal_loss(inputs2, targets2, reduction="mean")
    out2_none = focal_loss(inputs2, targets2, reduction="none")
    jax.block_until_ready((out2_mean, out2_none))
    assert jnp.allclose(out2_mean, _focal_loss_ref(inputs2, targets2, reduction="mean"),
                        rtol=1e-4, atol=1e-5), out2_mean
    assert jnp.allclose(out2_none, _focal_loss_ref(inputs2, targets2, reduction="none"),
                        rtol=1e-4, atol=1e-5)

    # Case 3: multi-block grid with a partial last row-block (block_rows=128)
    # -> exercises parallel per-block partial sums and the implicit edge block.
    shape3 = (3, 4, 60, 64)   # 46080 elems -> R = 360 rows -> grid=3, last block 104 rows
    inputs3 = jax.random.normal(k5, shape3, dtype=jnp.float32)
    targets3 = (jax.random.uniform(k6, shape3) > 0.5).astype(jnp.float32)
    out3_sum = focal_loss(inputs3, targets3, reduction="sum", block_rows=128)
    out3_none = focal_loss(inputs3, targets3, reduction="none", block_rows=128)
    jax.block_until_ready((out3_sum, out3_none))
    assert jnp.allclose(out3_sum, _focal_loss_ref(inputs3, targets3, reduction="sum"),
                        rtol=1e-4, atol=1e-2), out3_sum
    assert jnp.allclose(out3_none, _focal_loss_ref(inputs3, targets3, reduction="none"),
                        rtol=1e-4, atol=1e-5)

    print("KERNEL_OK")
</pallas_src>

<mosaic_0001>
module attributes {stable_mosaic.version = 11 : i64} {
  func.func @_focal_sum_kernel(%arg0: i32, %arg1: memref<16x128xf32, #tpu.memory_space<vmem>>, %arg2: memref<16x128xf32, #tpu.memory_space<vmem>>, %arg3: memref<1x1x128xf32, #tpu.memory_space<vmem>>) attributes {dimension_semantics = [#tpu.dimension_semantics<parallel>], iteration_bounds = array<i64: 1>, scalar_prefetch = 0 : i64, scratch_operands = 0 : i64, tpu.core_type = #tpu.core_type<tc>, window_params = [{transform_indices = @transform_0, window_bounds = array<i64: 16, 128>}, {transform_indices = @transform_1, window_bounds = array<i64: 16, 128>}, {transform_indices = @transform_2, window_bounds = array<i64: 1, 1, 128>}]} {
    %c0 = arith.constant 0 : index
    %c0_0 = arith.constant 0 : index
    %0 = vector.load %arg1[%c0, %c0_0] : memref<16x128xf32, #tpu.memory_space<vmem>>, vector<16x128xf32>
    %c0_1 = arith.constant 0 : index
    %c0_2 = arith.constant 0 : index
    %1 = vector.load %arg2[%c0_1, %c0_2] : memref<16x128xf32, #tpu.memory_space<vmem>>, vector<16x128xf32>
    %2 = arith.negf %0 : vector<16x128xf32>
    %3 = math.exp %2 : vector<16x128xf32>
    %cst = arith.constant 1.000000e+00 : f32
    %4 = vector.broadcast %cst : f32 to vector<16x128xf32>
    %5 = arith.addf %4, %3 : vector<16x128xf32>
    %6 = arith.divf %4, %5 : vector<16x128xf32>
    %cst_3 = arith.constant 1.000000e+00 : f32
    %7 = vector.broadcast %cst_3 : f32 to vector<16x128xf32>
    %8 = arith.cmpf oeq, %1, %7 : vector<16x128xf32>
    %cst_4 = arith.constant 1.000000e+00 : f32
    %9 = vector.broadcast %cst_4 : f32 to vector<16x128xf32>
    %10 = arith.subf %9, %6 : vector<16x128xf32>
    %11 = arith.select %8, %6, %10 : vector<16x128xi1>, vector<16x128xf32>
    %cst_5 = arith.constant 2.500000e-01 : f32
    %cst_6 = arith.constant 7.500000e-01 : f32
    %12 = vector.broadcast %cst_5 : f32 to vector<16x128xf32>
    %13 = vector.broadcast %cst_6 : f32 to vector<16x128xf32>
    %14 = arith.select %8, %12, %13 : vector<16x128xi1>, vector<16x128xf32>
    %cst_7 = arith.constant 1.000000e+00 : f32
    %15 = vector.broadcast %cst_7 : f32 to vector<16x128xf32>
    %16 = arith.subf %15, %11 : vector<16x128xf32>
    %17 = arith.mulf %16, %16 : vector<16x128xf32>
    %cst_8 = arith.constant 0.000000e+00 : f32
    %18 = vector.broadcast %cst_8 : f32 to vector<16x128xf32>
    %19 = arith.subf %18, %14 : vector<16x128xf32>
    %20 = arith.mulf %19, %17 : vector<16x128xf32>
    %cst_9 = arith.constant 9.99999993E-9 : f32
    %21 = vector.broadcast %cst_9 : f32 to vector<16x128xf32>
    %22 = arith.addf %11, %21 : vector<16x128xf32>
    %23 = math.log %22 : vector<16x128xf32>
    %24 = arith.mulf %20, %23 : vector<16x128xf32>
    %cst_10 = arith.constant dense<0.000000e+00> : vector<128xf32>
    %25 = vector.multi_reduction <add>, %24, %cst_10 [0] : vector<16x128xf32> to vector<128xf32>
    %26 = vector.shape_cast %25 : vector<128xf32> to vector<1x128xf32>
    %27 = vector.shape_cast %26 : vector<1x128xf32> to vector<1x1x128xf32>
    %c0_11 = arith.constant 0 : index
    %c0_12 = arith.constant 0 : index
    %c0_13 = arith.constant 0 : index
    %28 = vector.load %arg3[%c0_11, %c0_12, %c0_13] : memref<1x1x128xf32, #tpu.memory_space<vmem>>, vector<1x1x128xf32>
    tpu.vector_store %arg3[%c0_11, %c0_12, %c0_13], %27 {strides = array<i32>} : memref<1x1x128xf32, #tpu.memory_space<vmem>>, vector<1x1x128xf32>,
    return
  }
  func.func @transform_0(%arg0: i32) -> (i32, i32) {
    %c0_i32 = arith.constant 0 : i32
    %c0_i32_0 = arith.constant 0 : i32
    return %arg0, %c0_i32 : i32, i32
  }
  func.func @transform_1(%arg0: i32) -> (i32, i32) {
    %c0_i32 = arith.constant 0 : i32
    %c0_i32_0 = arith.constant 0 : i32
    return %arg0, %c0_i32 : i32, i32
  }
  func.func @transform_2(%arg0: i32) -> (i32, i32, i32) {
    %c0_i32 = arith.constant 0 : i32
    %c0_i32_0 = arith.constant 0 : i32
    %c0_i32_1 = arith.constant 0 : i32
    return %arg0, %c0_i32, %c0_i32_0 : i32, i32, i32
  }
}

</mosaic_0001>

<llo_original>
// kernel: tpu_custom_call.1
$region0: #{tpu_custom_call.1}
  #allocation0 [shape = 'u32[]', space=smem, size = 0x4, offset = 0x4, fixed_abs, tag = 'smem constant byte address 0x4 - core index']
  #allocation1 [shape = 'u32[144,128]{1,0:T(1,128)}', space=vmem, size = 0x12000, scoped, tag = 'internal scratch']
  %s0 = inlined_call_operand.hbm [shape: f32[16,128], index: 0, kind: input, shape index: {}]
  %s1 = inlined_call_operand.hbm [shape: f32[16,128], index: 1, kind: input, shape index: {}]
  %s2 = inlined_call_operand.hbm [shape: f32[1,1,128], index: 2, kind: output, shape index: {}]
  %s3 = sld [smem:[#allocation0]]
  $region26: #{tpu_custom_call.1} parent=0
    _
  %s5 = ssub.s32 1, %s3
  %s6 = scalar_select 0, %s5, %s3
  $region1: #{tpu_custom_call.1} parent=0
    #allocation2 [shape = 'u8[8192]{0}', space=vmem, size = 0x2000, scoped, tag = 'input window, operand 0, single buffered']
    #allocation3 [shape = 's32[1]{0}', space=sflag, size = 0x4, scoped, tag = 'scoped memory for tpu_custom_call.1']
    #allocation4 [shape = 's32[1]{0}', space=sflag, size = 0x4, scoped, tag = 'scoped memory for tpu_custom_call.1']
    #allocation5 [shape = 'u8[8192]{0}', space=vmem, size = 0x2000, scoped, tag = 'input window, operand 1, single buffered']
    #allocation6 [shape = 's32[1]{0}', space=sflag, size = 0x4, scoped, tag = 'scoped memory for tpu_custom_call.1']
    #allocation7 [shape = 'u8[512]{0}', space=vmem, size = 0x400, scoped, tag = 'output window, operand 0, single buffered']
    %7 = vsyncpa [#allocation3], 0
    %8 = vsyncpa [#allocation6], 0
    %9 = vsyncpa [#allocation4], 0
    // Predicated region
    $region2: #{tpu_custom_call.1} parent=1 // pred_check
      _
    $region3: #{tpu_custom_call.1} parent=1 // pred_check_branch
      %11 = sbr.rel (0) target = $region5
    $region4: #{tpu_custom_call.1} parent=1 // pred_region
      %s13 = ssub.s32 256, 256
      %14 = vsyncadd [#allocation3], %s13
      %s15 = sshll.u32 [#allocation2], 4
      %s16 = int_to_ptr.vmem [resolvable:$true] %s15
      %21 = dma.hbm_to_vmem [thread:$0]  %s0, 256, %s16, [#allocation3], 128, 128, 8
    $region5: #{tpu_custom_call.1} parent=1 // pred_fallthru
      _
    // Predicated region
    $region6: #{tpu_custom_call.1} parent=1 // pred_check
      _
    $region7: #{tpu_custom_call.1} parent=1 // pred_check_branch
      %23 = sbr.rel (0) target = $region9
    $region8: #{tpu_custom_call.1} parent=1 // pred_region
      %s25 = ssub.s32 256, 256
      %26 = vsyncadd [#allocation6], %s25
      %s27 = sshll.u32 [#allocation5], 4
      %s28 = int_to_ptr.vmem [resolvable:$true] %s27
      %33 = dma.hbm_to_vmem [thread:$0]  %s1, 256, %s28, [#allocation6], 128, 128, 8
    $region9: #{tpu_custom_call.1} parent=1 // pred_fallthru
      _
    // Predicated region
    $region10: #{tpu_custom_call.1} parent=1 // pred_check
      _
    $region11: #{tpu_custom_call.1} parent=1 // pred_check_branch
      %35 = sbr.rel (0) target = $region13
    $region12: #{tpu_custom_call.1} parent=1 // pred_region
      %36 = dma.done [#allocation3], 256
    $region13: #{tpu_custom_call.1} parent=1 // pred_fallthru
      _
    // Predicated region
    $region14: #{tpu_custom_call.1} parent=1 // pred_check
      _
    $region15: #{tpu_custom_call.1} parent=1 // pred_check_branch
      %38 = sbr.rel (0) target = $region17
    $region16: #{tpu_custom_call.1} parent=1 // pred_region
      %39 = dma.done [#allocation6], 256
    $region17: #{tpu_custom_call.1} parent=1 // pred_fallthru
      _
    %v40 = vld [vmem:[#allocation2] sm:$0xff]
    %v41 = vld [vmem:[#allocation2 + $0x8] sm:$0xff]
    %v42 = vld [vmem:[#allocation5] sm:$0xff]
    %v43 = vld [vmem:[#allocation5 + $0x8] sm:$0xff]
    %v44 = vxor.u32 %v40, 2147483648
    %v45 = vxor.u32 %v41, 2147483648
    %v46 = vmul.f32 %v44, 1.442695
    %v47 = vpow.pop %v46
    %v48 = vmul.f32 %v45, 1.442695
    %v49 = vpow.pop %v48
    %v50 = vadd.f32 %v47, 1.0
    %v51 = vadd.f32 %v49, 1.0
    %v52 = vrcp.pop %v50
    %v53 = vmul.f32 1.0, %v52
    %v54 = vrcp.pop %v51
    %v55 = vmul.f32 1.0, %v54
    %vm56 = vcmp.eq.f32.partialorder %v42, 1.0
    %vm57 = vcmp.eq.f32.partialorder %v43, 1.0
    %v58 = vsub.f32 1.0, %v53
    %v59 = vsub.f32 1.0, %v55
    %v60 = vsel %vm56, %v53, %v58
    %v61 = vsel %vm57, %v55, %v59
    %v62 = vsel %vm56, 0.25, 0.75
    %v63 = vsel %vm57, 0.25, 0.75
    %v64 = vsub.f32 1.0, %v60
    %v65 = vsub.f32 1.0, %v61
    %v66 = vmul.f32 %v64, %v64
    %v67 = vmul.f32 %v65, %v65
    %v68 = vsub.f32 0.0, %v62
    %v69 = vsub.f32 0.0, %v63
    %v70 = vmul.f32 %v68, %v66
    %v71 = vmul.f32 %v69, %v67
    %v72 = vadd.f32 %v60, 1e-08
    %v73 = vadd.f32 %v61, 1e-08
    %v74 = vlog2.pop %v72
    %v75 = vmul.f32 %v74, 0.6931472
    %v76 = vlog2.pop %v73
    %v77 = vmul.f32 %v76, 0.6931472
    %v78 = vmul.f32 %v70, %v75
    %v79 = vmul.f32 %v71, %v77
    %v80 = vadd.f32 %v78, %v79
    %v81 = vrot.slane %v80, 4
    %v82 = vadd.f32 %v80, %v81
    %v83 = vrot.slane %v82, 2
    %v84 = vadd.f32 %v82, %v83
    %v85 = vrot.slane %v84, 1
    %v86 = vadd.f32 %v84, %v85
    %87 = vst [vmem:[#allocation7] sm:$0x1] %v86
    // Predicated region
    $region18: #{tpu_custom_call.1} parent=1 // pred_check
      _
    $region19: #{tpu_custom_call.1} parent=1 // pred_check_branch
      %89 = sbr.rel (0) target = $region21
    $region20: #{tpu_custom_call.1} parent=1 // pred_region
      %s91 = ssub.s32 16, 16
      %92 = vsyncadd [#allocation4], %s91
      %s94 = sshll.u32 [#allocation7], 4
      %s95 = int_to_ptr.vmem [resolvable:$true] %s94
      %97 = dma.vmem_to_hbm [thread:$0]  %s95, 16, %s2, [#allocation4]
    $region21: #{tpu_custom_call.1} parent=1 // pred_fallthru
      _
    // Predicated region
    $region22: #{tpu_custom_call.1} parent=1 // pred_check
      _
    $region23: #{tpu_custom_call.1} parent=1 // pred_check_branch
      %99 = sbr.rel (0) target = $region25
    $region24: #{tpu_custom_call.1} parent=1 // pred_region
      %100 = dma.done [#allocation4], 16
    $region25: #{tpu_custom_call.1} parent=1 // pred_fallthru
      _
    %101 = vsyncpa [#allocation3], 1
    %102 = vsyncpa [#allocation6], 1
    %103 = vsyncpa [#allocation4], 1

</llo_original>
